<compile_context>
chip_gen: v5e
topology: v5e:2x2
jax: 0.10.0
libtpu: 0.0.40
codegen_flags: <defaults>
</compile_context>

<pallas_src>
import numpy as np
import jax
import jax.numpy as jnp
from jax.experimental import pallas as pl
from jax.experimental.pallas import tpu as pltpu

_LANE = 128
_SUBLANE = 8
# Single logits block budget (bytes, f32-equivalent, layout-padded).  With the
# pipeline's double buffering plus in-kernel f32 temporaries this stays well
# under the scoped-VMEM limit we request below on all generations.
_BLOCK_BUDGET_BYTES = 2 * 1024 * 1024
_VMEM_LIMIT_BYTES = 32 * 1024 * 1024


def _round_up(x: int, m: int) -> int:
    return ((x + m - 1) // m) * m


def _round_down(x: int, m: int) -> int:
    return (x // m) * m


def _make_loss_kernel(j: float, n_valid: int, tile_n: int,
                      batch_on_lanes: bool, ragged: bool):
    exp_neg_j = float(np.exp(-j))        # matches np.exp(-self.j) in the reference
    class_axis = 0 if batch_on_lanes else 1   # (C, TN) vs (TN, C)
    batch_axis = 1 - class_axis

    def kernel(x_ref, t_ref, o_ref):
        # x_ref: (C, TN) or (TN, C) logits block
        # t_ref: (1, TN) or (TN, 1) int32 class indices
        # o_ref: (1, 128) f32 per-tile partial sum (same value in every lane)
        i = pl.program_id(0)

        # Cast in-kernel (input may be bf16); exp/sums in f32 (v5e-safe).
        x = x_ref[...].astype(jnp.float32)
        t = t_ref[...]

        # Gather x[i, target[i]] via a one-hot compare over the class axis.
        class_ids = jax.lax.broadcasted_iota(jnp.int32, x.shape, class_axis)
        onehot = (class_ids == t).astype(jnp.float32)
        picked = jnp.sum(x * onehot, axis=class_axis, keepdims=True)

        # log( exp(-j) + sum_c exp(-x) ) per sample (EUP exp).
        sum_exp = jnp.sum(jnp.exp(-x), axis=class_axis, keepdims=True)
        per_sample = picked + jnp.log(exp_neg_j + sum_exp)

        if ragged:
            # Only needed when the grid over-runs the batch: drop garbage tail
            # samples with a select (NaN/inf-safe), not a multiply.
            pos = (jax.lax.broadcasted_iota(jnp.int32, per_sample.shape, batch_axis)
                   + i * tile_n)
            per_sample = jnp.where(pos < n_valid, per_sample, 0.0)

        tile_sum = jnp.sum(per_sample, keepdims=True)          # (1, 1)
        o_ref[...] = jnp.broadcast_to(tile_sum, (1, _LANE))

    return kernel


def training_loss(model_output: jax.Array, target_output: jax.Array,
                  j: float = 0.01, tile_n: int | None = None) -> jax.Array:
    """Pallas TPU implementation of TrainingLoss.forward.

    model_output: (N, C) float32 or bfloat16 logits
    target_output: (N,) integer class labels
    Returns a scalar float32 loss.
    """
    n, c = model_output.shape
    assert target_output.shape[0] == n
    itemsize = jnp.dtype(model_output.dtype).itemsize

    # Layout choice (per perf review):
    #   C >= 128: tile (N, C) directly — already lane-dense, zero wrapper copies.
    #   C <  128: keep batch on the 128-lane axis ((C, N)); one transpose, no pad.
    batch_on_lanes = c < _LANE

    if batch_on_lanes:
        x_in = model_output.T                                      # (C, N)
        t_in = target_output.astype(jnp.int32).reshape(1, n)       # (1, N)
        unit = _LANE
        per_col_bytes = _round_up(c, _SUBLANE) * 4                 # sublane-padded f32
    else:
        x_in = model_output                                        # (N, C)
        t_in = target_output.astype(jnp.int32).reshape(n, 1)       # (N, 1)
        unit = _SUBLANE
        per_col_bytes = _round_up(c, _LANE) * 4                    # lane-padded f32

    if tile_n is None:
        tile_n = max(unit, _round_down(_BLOCK_BUDGET_BYTES // per_col_bytes, unit))
    else:
        tile_n = max(unit, _round_down(int(tile_n), unit))

    if tile_n >= n:
        tile_n = n                        # one block == the full array (always legal)
    num_tiles = pl.cdiv(n, tile_n)
    ragged = (n % tile_n) != 0            # last block over-runs; masked in-kernel

    if batch_on_lanes:
        x_spec = pl.BlockSpec((c, tile_n), lambda i: (0, i))
        t_spec = pl.BlockSpec((1, tile_n), lambda i: (0, i))
    else:
        x_spec = pl.BlockSpec((tile_n, c), lambda i: (i, 0))
        t_spec = pl.BlockSpec((tile_n, 1), lambda i: (i, 0))

    kernel = _make_loss_kernel(j, n, tile_n, batch_on_lanes, ragged)

    partials = pl.pallas_call(
        kernel,
        out_shape=jax.ShapeDtypeStruct((1, num_tiles * _LANE), jnp.float32),
        grid_spec=pltpu.PrefetchScalarGridSpec(
            num_scalar_prefetch=0,
            grid=(num_tiles,),
            in_specs=[x_spec, t_spec],
            out_specs=pl.BlockSpec((1, _LANE), lambda i: (0, i)),
        ),
        compiler_params=pltpu.CompilerParams(
            dimension_semantics=("parallel",),          # no carry -> megacore OK
            vmem_limit_bytes=_VMEM_LIMIT_BYTES),
        cost_estimate=pl.CostEstimate(
            flops=6 * n * c,
            transcendentals=n * c + n,
            bytes_accessed=n * c * itemsize + n * 4 + num_tiles * _LANE * 4),
    )(x_in, t_in)

    tile_sums = partials.reshape(num_tiles, _LANE)[:, 0]
    return jnp.sum(tile_sums) / jnp.float32(n)


def _reference_loss(model_output, target_output, j=0.01):
    # Pure-JAX reference mirroring the PyTorch loop.
    x = model_output.astype(jnp.float32)
    n = x.shape[0]
    picked = x[jnp.arange(n), target_output.astype(jnp.int32)]
    log_term = jnp.log(np.exp(-j) + jnp.sum(jnp.exp(-x), axis=1))
    return jnp.sum(picked + log_term) / n


if __name__ == "__main__":
    key = jax.random.PRNGKey(0)
    k1, k2, k3, k4, k5, k6 = jax.random.split(key, 6)

    # 1) LeNet-scale: batch=8, 10-way classification (single full block, (C,N) path).
    logits = jax.random.normal(k1, (8, 10), dtype=jnp.float32)
    labels = jax.random.randint(k2, (8,), 0, 10, dtype=jnp.int32)
    loss = jax.block_until_ready(training_loss(logits, labels, j=0.01))
    ref = jax.block_until_ready(_reference_loss(logits, labels, j=0.01))
    assert jnp.allclose(loss, ref, rtol=1e-5, atol=1e-5), (loss, ref)

    # 2) Multi-tile + ragged tail on the lane-dense (C, N) path (no wrapper pad).
    logits2 = jax.random.normal(k3, (300, 10), dtype=jnp.float32)
    labels2 = jax.random.randint(k4, (300,), 0, 10, dtype=jnp.int32)
    loss2 = jax.block_until_ready(training_loss(logits2, labels2, j=0.01, tile_n=128))
    ref2 = jax.block_until_ready(_reference_loss(logits2, labels2, j=0.01))
    assert jnp.allclose(loss2, ref2, rtol=1e-5, atol=1e-4), (loss2, ref2)

    # 3) bf16 input path (no wrapper upcast; f32 compute inside the kernel).
    logits_bf16 = logits2.astype(jnp.bfloat16)
    loss3 = jax.block_until_ready(training_loss(logits_bf16, labels2, j=0.01, tile_n=128))
    ref3 = jax.block_until_ready(_reference_loss(logits_bf16, labels2, j=0.01))
    assert jnp.allclose(loss3, ref3, rtol=1e-3, atol=1e-2), (loss3, ref3)

    # 4) Large class count: direct (N, C) tiling (no transpose), ragged last tile.
    logits4 = jax.random.normal(k5, (200, 256), dtype=jnp.float32)
    labels4 = jax.random.randint(k6, (200,), 0, 256, dtype=jnp.int32)
    loss4 = jax.block_until_ready(training_loss(logits4, labels4, j=0.01, tile_n=64))
    ref4 = jax.block_until_ready(_reference_loss(logits4, labels4, j=0.01))
    assert jnp.allclose(loss4, ref4, rtol=1e-5, atol=1e-4), (loss4, ref4)

    print("KERNEL_OK")
</pallas_src>

<mosaic_0001>
module attributes {stable_mosaic.version = 11 : i64} {
  func.func @kernel(%arg0: i32, %arg1: memref<10x8xf32, #tpu.memory_space<vmem>>, %arg2: memref<1x8xi32, #tpu.memory_space<vmem>>, %arg3: memref<1x128xf32, #tpu.memory_space<vmem>>) attributes {dimension_semantics = [#tpu.dimension_semantics<parallel>], iteration_bounds = array<i64: 1>, scalar_prefetch = 0 : i64, scratch_operands = 0 : i64, tpu.core_type = #tpu.core_type<tc>, window_params = [{transform_indices = @transform_0, window_bounds = array<i64: 10, 8>}, {transform_indices = @transform_1, window_bounds = array<i64: 1, 8>}, {transform_indices = @transform_2, window_bounds = array<i64: 1, 128>}]} {
    %c0 = arith.constant 0 : index
    %c0_0 = arith.constant 0 : index
    %0 = vector.load %arg1[%c0, %c0_0] : memref<10x8xf32, #tpu.memory_space<vmem>>, vector<10x8xf32>
    %c0_1 = arith.constant 0 : index
    %c0_2 = arith.constant 0 : index
    %1 = vector.load %arg2[%c0_1, %c0_2] : memref<1x8xi32, #tpu.memory_space<vmem>>, vector<1x8xi32>
    %2 = tpu.iota {dimensions = array<i32: 0>} : vector<10x8xi32>
    %3 = vector.broadcast %1 : vector<1x8xi32> to vector<10x8xi32>
    %4 = arith.cmpi eq, %2, %3 : vector<10x8xi32>
    %5 = arith.extui %4 : vector<10x8xi1> to vector<10x8xi32>
    %6 = arith.sitofp %5 : vector<10x8xi32> to vector<10x8xf32>
    %7 = arith.mulf %0, %6 : vector<10x8xf32>
    %cst = arith.constant dense<0.000000e+00> : vector<8xf32>
    %8 = vector.multi_reduction <add>, %7, %cst [0] : vector<10x8xf32> to vector<8xf32>
    %9 = vector.shape_cast %8 : vector<8xf32> to vector<1x8xf32>
    %cst_3 = arith.constant 0.000000e+00 : f32
    %10 = vector.broadcast %cst_3 : f32 to vector<10x8xf32>
    %11 = arith.subf %10, %0 : vector<10x8xf32>
    %12 = math.exp %11 : vector<10x8xf32>
    %cst_4 = arith.constant dense<0.000000e+00> : vector<8xf32>
    %13 = vector.multi_reduction <add>, %12, %cst_4 [0] : vector<10x8xf32> to vector<8xf32>
    %14 = vector.shape_cast %13 : vector<8xf32> to vector<1x8xf32>
    %cst_5 = arith.constant 0.990049839 : f32
    %15 = vector.broadcast %cst_5 : f32 to vector<1x8xf32>
    %16 = arith.addf %15, %14 : vector<1x8xf32>
    %17 = math.log %16 : vector<1x8xf32>
    %18 = arith.addf %9, %17 : vector<1x8xf32>
    %19 = vector.shape_cast %18 : vector<1x8xf32> to vector<1x1x8xf32>
    %cst_6 = arith.constant dense<0.000000e+00> : vector<1xf32>
    %20 = vector.multi_reduction <add>, %19, %cst_6 [1, 2] : vector<1x1x8xf32> to vector<1xf32>
    %21 = vector.shape_cast %20 : vector<1xf32> to vector<1x1x1xf32>
    %22 = vector.extract %21[0, 0, 0] : f32 from vector<1x1x1xf32>
    %23 = vector.broadcast %22 : f32 to vector<1x1xf32>
    %24 = vector.shape_cast %23 : vector<1x1xf32> to vector<1x1xf32>
    %25 = vector.broadcast %24 : vector<1x1xf32> to vector<1x128xf32>
    %c0_7 = arith.constant 0 : index
    %c0_8 = arith.constant 0 : index
    %26 = vector.load %arg3[%c0_7, %c0_8] : memref<1x128xf32, #tpu.memory_space<vmem>>, vector<1x128xf32>
    tpu.vector_store %arg3[%c0_7, %c0_8], %25 {strides = array<i32>} : memref<1x128xf32, #tpu.memory_space<vmem>>, vector<1x128xf32>,
    return
  }
  func.func @transform_0(%arg0: i32) -> (i32, i32) {
    %c0_i32 = arith.constant 0 : i32
    %c0_i32_0 = arith.constant 0 : i32
    return %c0_i32, %arg0 : i32, i32
  }
  func.func @transform_1(%arg0: i32) -> (i32, i32) {
    %c0_i32 = arith.constant 0 : i32
    %c0_i32_0 = arith.constant 0 : i32
    return %c0_i32, %arg0 : i32, i32
  }
  func.func @transform_2(%arg0: i32) -> (i32, i32) {
    %c0_i32 = arith.constant 0 : i32
    %c0_i32_0 = arith.constant 0 : i32
    return %c0_i32, %arg0 : i32, i32
  }
}

</mosaic_0001>

<llo_original>
// kernel: tpu_custom_call.1
$region0: #{tpu_custom_call.1}
  #allocation0 [shape = 'u32[]', space=smem, size = 0x4, offset = 0x4, fixed_abs, tag = 'smem constant byte address 0x4 - core index']
  #allocation1 [shape = 'u32[72,128]{1,0:T(1,128)}', space=vmem, size = 0x9000, scoped, tag = 'internal scratch']
  %s0 = inlined_call_operand.vmem [shape: f32[10,8], index: 0, kind: input, shape index: {}]
  %s1 = inlined_call_operand.vmem [shape: s32[1,8], index: 1, kind: input, shape index: {}]
  %s2 = inlined_call_operand.hbm [shape: f32[1,128], index: 2, kind: output, shape index: {}]
  %s3 = sld [smem:[#allocation0]]
  $region18: #{tpu_custom_call.1} parent=0
    _
  %s5 = ssub.s32 1, %s3
  %s6 = scalar_select 0, %s5, %s3
  $region1: #{tpu_custom_call.1} parent=0
    #allocation2 [shape = 'u8[512]{0}', space=vmem, size = 0x400, scoped, tag = 'output window, operand 0, single buffered']
    #allocation3 [shape = 's32[1]{0}', space=sflag, size = 0x4, scoped, tag = 'scoped memory for tpu_custom_call.1']
    %7 = vsyncpa [#allocation3], 0
    // Predicated region
    $region2: #{tpu_custom_call.1} parent=1 // pred_check
      _
    $region3: #{tpu_custom_call.1} parent=1 // pred_check_branch
      %9 = sbr.rel (0) target = $region5
    $region4: #{tpu_custom_call.1} parent=1 // pred_region
      _
    $region5: #{tpu_custom_call.1} parent=1 // pred_fallthru
      _
    // Predicated region
    $region6: #{tpu_custom_call.1} parent=1 // pred_check
      _
    $region7: #{tpu_custom_call.1} parent=1 // pred_check_branch
      %11 = sbr.rel (0) target = $region9
    $region8: #{tpu_custom_call.1} parent=1 // pred_region
      _
    $region9: #{tpu_custom_call.1} parent=1 // pred_fallthru
      _
    %v12 = vld [vmem:[%s0] sm:$0xff]
    %v13 = vld [vmem:[%s0 + $0x8] sm:$0x3]
    %v14 = vld [vmem:[%s1] sm:$0x1]
    %v15 = vlaneseq
    %v16 = vshrl.u32 %v15, 7
    %v17 = vadd.s32 %v16, 8
    %v18 = vperm.slane %v14, 0
    %vm19 = vcmp.eq.s32.totalorder %v16, %v18
    %vm20 = vcmp.eq.s32.totalorder %v17, %v18
    %v21 = vsel %vm19, 1, 0
    %v22 = vsel %vm20, 1, 0
    %v23 = vcvt.s32.f32 %v21
    %v24 = vcvt.s32.f32 %v22
    %v25 = vmul.f32 %v12, %v23
    %v26 = vmul.f32 %v13, %v24
    %vm27 = vcmask 64512
    %v28 = vsel %vm27, %v25, 0.0
    %vm29 = vcmask 58368
    %v30 = vsel %vm29, %v26, 0.0
    %v31 = vadd.f32 %v28, %v30
    %v32 = vrot.slane %v31, 4
    %v33 = vadd.f32 %v31, %v32
    %v34 = vrot.slane %v33, 2
    %v35 = vadd.f32 %v33, %v34
    %v36 = vrot.slane %v35, 1
    %v37 = vadd.f32 %v35, %v36
    %v38 = vsub.f32 0.0, %v12
    %v39 = vsub.f32 0.0, %v13
    %v40 = vmul.f32 %v38, 1.442695
    %v41 = vpow.pop %v40
    %v42 = vmul.f32 %v39, 1.442695
    %v43 = vpow.pop %v42
    %v44 = vsel %vm27, %v41, 0.0
    %v45 = vsel %vm29, %v43, 0.0
    %v46 = vadd.f32 %v44, %v45
    %v47 = vrot.slane %v46, 4
    %v48 = vadd.f32 %v46, %v47
    %v49 = vrot.slane %v48, 2
    %v50 = vadd.f32 %v48, %v49
    %v51 = vrot.slane %v50, 1
    %v52 = vadd.f32 %v50, %v51
    %v53 = vadd.f32 %v52, 0.99004984
    %v54 = vlog2.pop %v53
    %v55 = vmul.f32 %v54, 0.6931472
    %v56 = vadd.f32 %v37, %v55
    %vm57 = vcmask 57344
    %v58 = vsel %vm57, %v56, 0.0
    %59 = vadd.xlane.f32.xlu0 %v58
    %v60 = vpop.xlane.xlu0 %59
    %v61 = vrot.slane %v60, 4
    %v62 = vadd.f32 %v60, %v61
    %v63 = vrot.slane %v62, 2
    %v64 = vadd.f32 %v62, %v63
    %v65 = vrot.slane %v64, 1
    %v66 = vadd.f32 %v64, %v65
    %s67 = vtos %v66
    %v68 = vstv %s67
    %69 = vst [vmem:[#allocation2] sm:$0x1] %v68
    // Predicated region
    $region10: #{tpu_custom_call.1} parent=1 // pred_check
      _
    $region11: #{tpu_custom_call.1} parent=1 // pred_check_branch
      %71 = sbr.rel (0) target = $region13
    $region12: #{tpu_custom_call.1} parent=1 // pred_region
      %73 = vsyncadd [#allocation3], 0
      %s75 = sshll.u32 [#allocation2], 4
      %s76 = int_to_ptr.vmem [resolvable:$true] %s75
      %s77 = sshll.u32 %s2, 4
      %s78 = int_to_ptr.hbm [resolvable:$true] %s77
      %80 = dma.vmem_to_hbm [thread:$0]  %s76, 16, %s78, [#allocation3]
    $region13: #{tpu_custom_call.1} parent=1 // pred_fallthru
      _
    // Predicated region
    $region14: #{tpu_custom_call.1} parent=1 // pred_check
      _
    $region15: #{tpu_custom_call.1} parent=1 // pred_check_branch
      %82 = sbr.rel (0) target = $region17
    $region16: #{tpu_custom_call.1} parent=1 // pred_region
      %84 = dma.done [#allocation3], 16
    $region17: #{tpu_custom_call.1} parent=1 // pred_fallthru
      _
    %85 = vsyncpa [#allocation3], 1

</llo_original>
